<compile_context>
chip_gen: v7x
topology: tpu7x:2x2x1
jax: 0.10.0
libtpu: 0.0.40
codegen_flags: <defaults>
</compile_context>

<pallas_src>
import math

import jax
import jax.numpy as jnp
from jax.experimental import pallas as pl
from jax.experimental.pallas import tpu as pltpu

_LANE = 128
_MAX_COLS = 4096
_TARGET_BLOCK_BYTES = 2 * 1024 * 1024  # per-operand block size target


def _add_one_kernel(w_ref, o_ref):
    # ones_like(difference) + weight  ==  weight + 1  (scalar immediate add)
    o_ref[...] = w_ref[...] + 1


def _fill_kernel(fill_ref, o_ref):
    # fill_ref is a (1, 1) tile holding (weight + 1); broadcast it to the tile.
    o_ref[...] = jnp.broadcast_to(fill_ref[...], o_ref.shape)


def _slab_geometry(total):
    """(rows, cols, pad): lane-dense 2D factorization of `total` elements."""
    if total >= _LANE:
        c = min(_MAX_COLS, (total // _LANE) * _LANE)
        while c >= _LANE:
            if total % c == 0:
                return total // c, c, 0
            c -= _LANE
    # Fallback for sizes with no 128-multiple divisor: pad (rare).
    cols = _LANE if total < _MAX_COLS else _MAX_COLS
    padded = pl.cdiv(total, cols) * cols
    return padded // cols, cols, padded - total


def one_forward(difference, weight):
    """Pallas equivalent of One.forward(difference)."""
    shape = difference.shape
    dtype = difference.dtype
    total = math.prod(shape)
    itemsize = jnp.dtype(dtype).itemsize

    weight = jnp.asarray(weight)

    rows, cols, pad = _slab_geometry(total)

    # Row tile: ~2 MiB per block, multiple of 8 rows (or the full row count).
    tile_r = max(8, (_TARGET_BLOCK_BYTES // (cols * itemsize)) // 8 * 8)
    if rows <= tile_r:
        tile_r = rows
    grid = (pl.cdiv(rows, tile_r),)

    out_spec = pl.BlockSpec((tile_r, cols), lambda i: (i, 0))
    compiler_params = pltpu.CompilerParams(dimension_semantics=("parallel",))

    if weight.size == 1:
        # Scalar weight: pure fill -> only the output moves through HBM.
        fill = (weight.reshape(()).astype(dtype) + 1).reshape(1, 1)
        out2d = pl.pallas_call(
            _fill_kernel,
            out_shape=jax.ShapeDtypeStruct((rows, cols), dtype),
            grid_spec=pltpu.PrefetchScalarGridSpec(
                num_scalar_prefetch=0,
                grid=grid,
                in_specs=[pl.BlockSpec((1, 1), lambda i: (0, 0))],
                out_specs=out_spec,
            ),
            compiler_params=compiler_params,
            cost_estimate=pl.CostEstimate(
                flops=0, transcendentals=0,
                bytes_accessed=rows * cols * itemsize,
            ),
        )(fill)
    else:
        # Tensor weight: stream it.  Reshape of a contiguous array is free;
        # the pad copy only triggers for element counts with no 128-multiple
        # divisor (the test shapes hit the no-pad path).
        w = jnp.broadcast_to(weight, shape).astype(dtype).reshape(-1)
        if pad:
            w = jnp.pad(w, (0, pad))
        w2d = w.reshape(rows, cols)
        out2d = pl.pallas_call(
            _add_one_kernel,
            out_shape=jax.ShapeDtypeStruct((rows, cols), dtype),
            grid_spec=pltpu.PrefetchScalarGridSpec(
                num_scalar_prefetch=0,
                grid=grid,
                in_specs=[pl.BlockSpec((tile_r, cols), lambda i: (i, 0))],
                out_specs=out_spec,
            ),
            compiler_params=compiler_params,
            cost_estimate=pl.CostEstimate(
                flops=total, transcendentals=0,
                bytes_accessed=2 * rows * cols * itemsize,
            ),
        )(w2d)

    out = out2d.reshape(-1)
    if pad:
        out = out[:total]
    return out.reshape(shape)


if __name__ == "__main__":
    key = jax.random.PRNGKey(0)
    k_diff, k_w = jax.random.split(key)

    # Small NCHW shapes consistent with the module.
    N, C, H, W = 2, 4, 16, 16
    difference = jax.random.normal(k_diff, (N, C, H, W), dtype=jnp.float32)
    weight = jax.random.normal(k_w, (N, C, H, W), dtype=jnp.float32)

    # Tensor-weight (streaming) path.
    out = jax.block_until_ready(one_forward(difference, weight))
    ref = jnp.ones_like(difference) + weight
    assert out.shape == difference.shape
    assert out.dtype == difference.dtype
    assert jnp.allclose(out, ref, atol=1e-6), "mismatch vs reference (tensor weight)"

    # Scalar-weight (fill) fast path.
    w_scalar = jnp.float32(0.25)
    out_s = jax.block_until_ready(one_forward(difference, w_scalar))
    ref_s = jnp.ones_like(difference) + w_scalar
    assert jnp.allclose(out_s, ref_s, atol=1e-6), "mismatch vs reference (scalar weight)"

    print("KERNEL_OK")
</pallas_src>

<mosaic_0001>
module attributes {stable_mosaic.version = 11 : i64} {
  func.func @_add_one_kernel(%arg0: i32, %arg1: memref<1x2048xf32, #tpu.memory_space<vmem>>, %arg2: memref<1x2048xf32, #tpu.memory_space<vmem>>) attributes {dimension_semantics = [#tpu.dimension_semantics<parallel>], iteration_bounds = array<i64: 1>, scalar_prefetch = 0 : i64, scratch_operands = 0 : i64, tpu.core_type = #tpu.core_type<tc>, window_params = [{transform_indices = @transform_0, window_bounds = array<i64: 1, 2048>}, {transform_indices = @transform_1, window_bounds = array<i64: 1, 2048>}]} {
    %c0 = arith.constant 0 : index
    %c0_0 = arith.constant 0 : index
    %0 = vector.load %arg1[%c0, %c0_0] : memref<1x2048xf32, #tpu.memory_space<vmem>>, vector<1x2048xf32>
    %cst = arith.constant 1.000000e+00 : f32
    %1 = vector.broadcast %cst : f32 to vector<1x2048xf32>
    %2 = arith.addf %0, %1 : vector<1x2048xf32>
    %c0_1 = arith.constant 0 : index
    %c0_2 = arith.constant 0 : index
    %3 = vector.load %arg2[%c0_1, %c0_2] : memref<1x2048xf32, #tpu.memory_space<vmem>>, vector<1x2048xf32>
    tpu.vector_store %arg2[%c0_1, %c0_2], %2 {strides = array<i32>} : memref<1x2048xf32, #tpu.memory_space<vmem>>, vector<1x2048xf32>,
    return
  }
  func.func @transform_0(%arg0: i32) -> (i32, i32) {
    %c0_i32 = arith.constant 0 : i32
    %c0_i32_0 = arith.constant 0 : i32
    return %arg0, %c0_i32 : i32, i32
  }
  func.func @transform_1(%arg0: i32) -> (i32, i32) {
    %c0_i32 = arith.constant 0 : i32
    %c0_i32_0 = arith.constant 0 : i32
    return %arg0, %c0_i32 : i32, i32
  }
}

</mosaic_0001>

<llo_original>
// kernel: tpu_custom_call.1
$region0: #{tpu_custom_call.1}
  #allocation0 [shape = 'u32[]', space=smem, size = 0x4, offset = 0x4, fixed_abs, tag = 'smem constant byte address 0x4 - core index']
  #allocation1 [shape = 'u32[144,128]{1,0:T(1,128)}', space=vmem, size = 0x12000, scoped, tag = 'internal scratch']
  %s0 = inlined_call_operand.hbm [shape: f32[1,2048], index: 0, kind: input, shape index: {}]
  %s1 = inlined_call_operand.hbm [shape: f32[1,2048], index: 1, kind: output, shape index: {}]
  %s2 = sld [smem:[#allocation0]]
  $region18: #{tpu_custom_call.1} parent=0
    _
  %s4 = ssub.s32 1, %s2
  %s5 = scalar_select 0, %s4, %s2
  $region1: #{tpu_custom_call.1} parent=0
    #allocation2 [shape = 'u8[8192]{0}', space=vmem, size = 0x2000, scoped, tag = 'input window, operand 0, single buffered']
    #allocation3 [shape = 's32[1]{0}', space=sflag, size = 0x4, scoped, tag = 'scoped memory for tpu_custom_call.1']
    #allocation4 [shape = 's32[1]{0}', space=sflag, size = 0x4, scoped, tag = 'scoped memory for tpu_custom_call.1']
    #allocation5 [shape = 'u8[8192]{0}', space=vmem, size = 0x2000, scoped, tag = 'output window, operand 0, single buffered']
    %6 = vsyncpa [#allocation3], 0
    %7 = vsyncpa [#allocation4], 0
    // Predicated region
    $region2: #{tpu_custom_call.1} parent=1 // pred_check
      _
    $region3: #{tpu_custom_call.1} parent=1 // pred_check_branch
      %9 = sbr.rel (0) target = $region5
    $region4: #{tpu_custom_call.1} parent=1 // pred_region
      %s11 = ssub.s32 256, 256
      %12 = vsyncadd [#allocation3], %s11
      %s14 = sshll.u32 [#allocation2], 4
      %s15 = int_to_ptr.vmem [resolvable:$true] %s14
      %17 = dma.hbm_to_vmem [thread:$0]  %s0, 256, %s15, [#allocation3]
    $region5: #{tpu_custom_call.1} parent=1 // pred_fallthru
      _
    // Predicated region
    $region6: #{tpu_custom_call.1} parent=1 // pred_check
      _
    $region7: #{tpu_custom_call.1} parent=1 // pred_check_branch
      %19 = sbr.rel (0) target = $region9
    $region8: #{tpu_custom_call.1} parent=1 // pred_region
      %20 = dma.done [#allocation3], 256
    $region9: #{tpu_custom_call.1} parent=1 // pred_fallthru
      _
    %v21 = vld [vmem:[#allocation2] sm:$0xff]
    %v22 = vld [vmem:[#allocation2 + $0x8] sm:$0xff]
    %v23 = vadd.f32 %v21, 1.0
    %v24 = vadd.f32 %v22, 1.0
    %25 = vst [vmem:[#allocation5] sm:$0xff] %v23
    %26 = vst [vmem:[#allocation5 + $0x8] sm:$0xff] %v24
    // Predicated region
    $region10: #{tpu_custom_call.1} parent=1 // pred_check
      _
    $region11: #{tpu_custom_call.1} parent=1 // pred_check_branch
      %28 = sbr.rel (0) target = $region13
    $region12: #{tpu_custom_call.1} parent=1 // pred_region
      %s30 = ssub.s32 256, 256
      %31 = vsyncadd [#allocation4], %s30
      %s33 = sshll.u32 [#allocation5], 4
      %s34 = int_to_ptr.vmem [resolvable:$true] %s33
      %36 = dma.vmem_to_hbm [thread:$0]  %s34, 256, %s1, [#allocation4]
    $region13: #{tpu_custom_call.1} parent=1 // pred_fallthru
      _
    // Predicated region
    $region14: #{tpu_custom_call.1} parent=1 // pred_check
      _
    $region15: #{tpu_custom_call.1} parent=1 // pred_check_branch
      %38 = sbr.rel (0) target = $region17
    $region16: #{tpu_custom_call.1} parent=1 // pred_region
      %39 = dma.done [#allocation4], 256
    $region17: #{tpu_custom_call.1} parent=1 // pred_fallthru
      _
    %40 = vsyncpa [#allocation3], 1
    %41 = vsyncpa [#allocation4], 1

</llo_original>
